<compile_context>
chip_gen: v7x
topology: tpu7x:2x2x1
jax: 0.10.0
libtpu: 0.0.40
codegen_flags: <defaults>
</compile_context>

<pallas_src>
import jax
import jax.numpy as jnp
from jax.experimental import pallas as pl
from jax.experimental.pallas import tpu as pltpu


_LANE = 128
_B_BLK_CAP = 2048   # batch columns per grid step; per-block VMEM stays ~1-2 MiB


def _round_up(x, m):
    return ((x + m - 1) // m) * m


def _pick_blocks(batch):
    """(batch_block, num_blocks); batch_block is a multiple of 128 lanes."""
    if batch <= 2 * _LANE:                       # too small to split usefully
        return _round_up(max(batch, 1), _LANE), 1
    nblk = max(2, pl.cdiv(batch, _B_BLK_CAP))
    if nblk % 2:                                 # even block count -> both v7x TCs busy
        nblk += 1
    b_blk = _round_up(pl.cdiv(batch, nblk), _LANE)
    return b_blk, nblk


def _conv1d_same_as_dense(w, L, *, in_layout):
    """Express Conv1d(kernel K, stride 1, padding='same') as one dense matmul.

    w: (Cout, Cin, K) PyTorch conv weight.  Returns W of shape (Cin*L, L*Cout) with
      y_flat = x_flat @ W, where
        x_flat index r = c*L + j   (in_layout='cl', torch reshape(B, Cin, L) order)
                       = j*Cin + c (in_layout='lc')
        y_flat index   = l*Cout + o.
    The 'same' zero padding is encoded by zero off-band entries.
    """
    Cout, Cin, K = w.shape
    pad = (K - 1) // 2
    j = jnp.arange(L)[:, None]                   # input position
    l = jnp.arange(L)[None, :]                   # output position
    d = j - l + pad                              # tap index
    valid = (d >= 0) & (d < K)
    dcl = jnp.clip(d, 0, K - 1)
    w_t = jnp.transpose(w.astype(jnp.float32), (1, 2, 0))           # (Cin, K, Cout)
    taps = jnp.where(valid[None, :, :, None], w_t[:, dcl, :], 0.0)  # (Cin, L, L, Cout)
    if in_layout == "cl":
        return taps.reshape(Cin * L, L * Cout)
    return jnp.transpose(taps, (1, 0, 2, 3)).reshape(L * Cin, L * Cout)


def cnn_kernel(x_ref, w1_ref, b1_ref, w2_ref, b2_ref, wd_ref, bd_ref, out_ref):
    # Feature-major ("batch in lanes") layout — batch is the lane axis everywhere,
    # so no in-kernel reshape / concat / roll / mask is needed.
    #   x_ref : (Cin*L, Bb)    f32  flat input features (row = c*L + l)
    #   w1_ref: (L*H0, Cin*L)  f32  conv1 as banded dense matrix (transposed)
    #   b1_ref: (L*H0, 1)      f32  conv1 bias tiled over positions
    #   w2_ref: (L*H1, L*H0)   f32  conv2 as banded dense matrix (transposed)
    #   b2_ref: (L*H1, 1)      f32
    #   wd_ref: (C, H1)        f32  decoder weight (PyTorch layout, used as-is)
    #   bd_ref: (C, 1)         f32
    #   out_ref:(C, Bb)        f32
    H1 = wd_ref.shape[1]
    L = w2_ref.shape[0] // H1

    x = x_ref[...]

    # conv1 (k=3, 'same') + ReLU: one MXU dot; zero padding lives in the band matrix.
    h = jnp.dot(w1_ref[...], x, preferred_element_type=jnp.float32) + b1_ref[...]
    h = jnp.maximum(h, 0.0)                                  # (L*H0, Bb)

    # conv2 (k=3, 'same') + ReLU
    g = jnp.dot(w2_ref[...], h, preferred_element_type=jnp.float32) + b2_ref[...]
    g = jnp.maximum(g, 0.0)                                  # (L*H1, Bb)

    # MaxPool1d(L): rows are ordered l*H1 + o, so the pool is a segment max over row
    # blocks of size H1.  Static slices on 8-row boundaries are pure views.
    if L & (L - 1) == 0:                                     # power-of-two L: tree
        m = g
        size = L * H1
        while size > H1:
            half = size // 2
            m = jnp.maximum(m[:half, :], m[half:size, :])
            size = half
    else:                                                    # general L: sequential
        m = g[:H1, :]
        for pos in range(1, L):
            m = jnp.maximum(m, g[pos * H1:(pos + 1) * H1, :])
    # m: (H1, Bb) == pooled activations (transposed)

    # decoder Linear(H1 -> C)
    out_ref[...] = (jnp.dot(wd_ref[...], m, preferred_element_type=jnp.float32)
                    + bd_ref[...])


def cnn_forward(x, w1, b1, w2, b2, wd, bd):
    """x: (B, features); weights in PyTorch layout:
       w1 (H0,2,3), b1 (H0,), w2 (H1,H0,3), b2 (H1,), wd (C,H1), bd (C,)."""
    x = x.astype(jnp.float32)
    B, F = x.shape
    Cin = 2
    L = F // Cin
    H0, H1, C = w1.shape[0], w2.shape[0], wd.shape[0]

    b_blk, nblk = _pick_blocks(B)
    B_pad = b_blk * nblk

    # Wrapper-side layout plumbing (XLA): batch-in-lanes input, banded conv weights.
    # torch's reshape(B, 2, L) is a view of the flat feature axis, so the flat
    # feature index is already c*L + l -> a plain transpose is all the input needs.
    x_t = x.T                                                        # (F, B)
    if B_pad != B:
        x_t = jnp.pad(x_t, ((0, 0), (0, B_pad - B)))

    w1_k = _conv1d_same_as_dense(w1, L, in_layout="cl").T            # (L*H0, F)
    w2_k = _conv1d_same_as_dense(w2, L, in_layout="lc").T            # (L*H1, L*H0)
    b1_k = jnp.tile(b1.astype(jnp.float32), L).reshape(L * H0, 1)
    b2_k = jnp.tile(b2.astype(jnp.float32), L).reshape(L * H1, 1)
    wd_k = wd.astype(jnp.float32)                                    # (C, H1)
    bd_k = bd.astype(jnp.float32).reshape(C, 1)

    out_t = pl.pallas_call(
        cnn_kernel,
        out_shape=jax.ShapeDtypeStruct((C, B_pad), jnp.float32),
        grid_spec=pltpu.PrefetchScalarGridSpec(
            num_scalar_prefetch=0,
            grid=(nblk,),
            in_specs=[
                pl.BlockSpec((F, b_blk), lambda i: (0, i)),
                # grid-invariant weights / biases (whole arrays, constant index_map)
                pl.BlockSpec((L * H0, F), lambda i: (0, 0)),
                pl.BlockSpec((L * H0, 1), lambda i: (0, 0)),
                pl.BlockSpec((L * H1, L * H0), lambda i: (0, 0)),
                pl.BlockSpec((L * H1, 1), lambda i: (0, 0)),
                pl.BlockSpec((C, H1), lambda i: (0, 0)),
                pl.BlockSpec((C, 1), lambda i: (0, 0)),
            ],
            out_specs=pl.BlockSpec((C, b_blk), lambda i: (0, i)),
        ),
        compiler_params=pltpu.CompilerParams(
            dimension_semantics=("parallel",)),
    )(x_t, w1_k, b1_k, w2_k, b2_k, wd_k, bd_k)

    return out_t.T[:B]                                               # (B, C)


def reference(x, params):
    """Pure-JAX f32 mirror of the PyTorch forward (NCL layout, do_bn=False, dropout=0)."""
    w1, b1, w2, b2, wd, bd = params
    x = x.astype(jnp.float32)
    B = x.shape[0]
    xr = x.reshape(B, 2, -1)                                         # (B, 2, L)

    def conv1d_same_ncl(v, w, b):
        Lv = v.shape[-1]
        vp = jnp.pad(v, ((0, 0), (0, 0), (1, 1)))
        taps = jnp.stack([vp[:, :, k:k + Lv] for k in range(3)], axis=-1)  # (B,Cin,L,3)
        return jnp.einsum('bclk,ock->bol', taps, w) + b[None, :, None]

    h = jax.nn.relu(conv1d_same_ncl(xr, w1, b1))
    g = jax.nn.relu(conv1d_same_ncl(h, w2, b2))
    pooled = jnp.max(g, axis=-1)                                     # MaxPool1d(L)
    return pooled @ wd.T + bd


if __name__ == "__main__":
    # Shapes consistent with the module: features=16 -> L=8 after the reshape to 2
    # channels; hidden_size=(8, 16); class_num=4; batch=2.
    B, features = 2, 16
    hidden = (8, 16)
    class_num = 4

    key = jax.random.PRNGKey(0)
    ks = jax.random.split(key, 7)
    x = jax.random.normal(ks[0], (B, features), jnp.float32)
    w1 = jax.random.normal(ks[1], (hidden[0], 2, 3), jnp.float32) * 0.3
    b1 = jax.random.normal(ks[2], (hidden[0],), jnp.float32) * 0.1
    w2 = jax.random.normal(ks[3], (hidden[1], hidden[0], 3), jnp.float32) * 0.3
    b2 = jax.random.normal(ks[4], (hidden[1],), jnp.float32) * 0.1
    wd = jax.random.normal(ks[5], (class_num, hidden[1]), jnp.float32) * 0.3
    bd = jax.random.normal(ks[6], (class_num,), jnp.float32) * 0.1

    out = cnn_forward(x, w1, b1, w2, b2, wd, bd)
    out = jax.block_until_ready(out)

    ref = reference(x, (w1, b1, w2, b2, wd, bd))
    assert out.shape == (B, class_num)
    assert jnp.allclose(out, ref, atol=2e-2, rtol=2e-2), (out, ref)

    print("KERNEL_OK")
</pallas_src>

<mosaic_0001>
module attributes {stable_mosaic.version = 11 : i64} {
  func.func @cnn_kernel(%arg0: i32, %arg1: memref<16x128xf32, #tpu.memory_space<vmem>>, %arg2: memref<64x16xf32, #tpu.memory_space<vmem>>, %arg3: memref<64x1xf32, #tpu.memory_space<vmem>>, %arg4: memref<128x64xf32, #tpu.memory_space<vmem>>, %arg5: memref<128x1xf32, #tpu.memory_space<vmem>>, %arg6: memref<4x16xf32, #tpu.memory_space<vmem>>, %arg7: memref<4x1xf32, #tpu.memory_space<vmem>>, %arg8: memref<4x128xf32, #tpu.memory_space<vmem>>) attributes {dimension_semantics = [#tpu.dimension_semantics<parallel>], iteration_bounds = array<i64: 1>, scalar_prefetch = 0 : i64, scratch_operands = 0 : i64, tpu.core_type = #tpu.core_type<tc>, window_params = [{transform_indices = @transform_0, window_bounds = array<i64: 16, 128>}, {pipeline_mode = #tpu.pipeline_mode<synchronous>, transform_indices = @transform_1, window_bounds = array<i64: 64, 16>}, {pipeline_mode = #tpu.pipeline_mode<synchronous>, transform_indices = @transform_2, window_bounds = array<i64: 64, 1>}, {pipeline_mode = #tpu.pipeline_mode<synchronous>, transform_indices = @transform_3, window_bounds = array<i64: 128, 64>}, {pipeline_mode = #tpu.pipeline_mode<synchronous>, transform_indices = @transform_4, window_bounds = array<i64: 128, 1>}, {pipeline_mode = #tpu.pipeline_mode<synchronous>, transform_indices = @transform_5, window_bounds = array<i64: 4, 16>}, {pipeline_mode = #tpu.pipeline_mode<synchronous>, transform_indices = @transform_6, window_bounds = array<i64: 4, 1>}, {transform_indices = @transform_7, window_bounds = array<i64: 4, 128>}]} {
    %c0 = arith.constant 0 : index
    %c0_0 = arith.constant 0 : index
    %0 = vector.load %arg1[%c0, %c0_0] : memref<16x128xf32, #tpu.memory_space<vmem>>, vector<16x128xf32>
    %c0_1 = arith.constant 0 : index
    %c0_2 = arith.constant 0 : index
    %1 = vector.load %arg2[%c0_1, %c0_2] : memref<64x16xf32, #tpu.memory_space<vmem>>, vector<64x16xf32>
    %cst = arith.constant dense<0.000000e+00> : vector<64x128xf32>
    %2 = tpu.matmul %1, %0, %cst {dimension_numbers = #tpu.dot_dimension_numbers<[1], [0], [0], [1], [0, 0, 1, 1], [], []>} : vector<64x16xf32>, vector<16x128xf32>, vector<64x128xf32> -> vector<64x128xf32>
    %c0_3 = arith.constant 0 : index
    %c0_4 = arith.constant 0 : index
    %3 = vector.load %arg3[%c0_3, %c0_4] : memref<64x1xf32, #tpu.memory_space<vmem>>, vector<64x1xf32>
    %4 = vector.broadcast %3 : vector<64x1xf32> to vector<64x128xf32>
    %5 = arith.addf %2, %4 : vector<64x128xf32>
    %cst_5 = arith.constant 0.000000e+00 : f32
    %6 = vector.broadcast %cst_5 : f32 to vector<64x128xf32>
    %7 = arith.maximumf %5, %6 : vector<64x128xf32>
    %c0_6 = arith.constant 0 : index
    %c0_7 = arith.constant 0 : index
    %8 = vector.load %arg4[%c0_6, %c0_7] : memref<128x64xf32, #tpu.memory_space<vmem>>, vector<128x64xf32>
    %cst_8 = arith.constant dense<0.000000e+00> : vector<128x128xf32>
    %9 = tpu.matmul %8, %7, %cst_8 {dimension_numbers = #tpu.dot_dimension_numbers<[1], [0], [0], [1], [0, 0, 1, 1], [], []>} : vector<128x64xf32>, vector<64x128xf32>, vector<128x128xf32> -> vector<128x128xf32>
    %c0_9 = arith.constant 0 : index
    %c0_10 = arith.constant 0 : index
    %10 = vector.load %arg5[%c0_9, %c0_10] : memref<128x1xf32, #tpu.memory_space<vmem>>, vector<128x1xf32>
    %11 = vector.broadcast %10 : vector<128x1xf32> to vector<128x128xf32>
    %12 = arith.addf %9, %11 : vector<128x128xf32>
    %cst_11 = arith.constant 0.000000e+00 : f32
    %13 = vector.broadcast %cst_11 : f32 to vector<128x128xf32>
    %14 = arith.maximumf %12, %13 : vector<128x128xf32>
    %15 = vector.extract_strided_slice %14 {offsets = [0, 0], sizes = [64, 128], strides = [1, 1]} : vector<128x128xf32> to vector<64x128xf32>
    %16 = vector.extract_strided_slice %14 {offsets = [64, 0], sizes = [64, 128], strides = [1, 1]} : vector<128x128xf32> to vector<64x128xf32>
    %17 = arith.maximumf %15, %16 : vector<64x128xf32>
    %18 = vector.extract_strided_slice %17 {offsets = [0, 0], sizes = [32, 128], strides = [1, 1]} : vector<64x128xf32> to vector<32x128xf32>
    %19 = vector.extract_strided_slice %17 {offsets = [32, 0], sizes = [32, 128], strides = [1, 1]} : vector<64x128xf32> to vector<32x128xf32>
    %20 = arith.maximumf %18, %19 : vector<32x128xf32>
    %21 = vector.extract_strided_slice %20 {offsets = [0, 0], sizes = [16, 128], strides = [1, 1]} : vector<32x128xf32> to vector<16x128xf32>
    %22 = vector.extract_strided_slice %20 {offsets = [16, 0], sizes = [16, 128], strides = [1, 1]} : vector<32x128xf32> to vector<16x128xf32>
    %23 = arith.maximumf %21, %22 : vector<16x128xf32>
    %c0_12 = arith.constant 0 : index
    %c0_13 = arith.constant 0 : index
    %24 = vector.load %arg6[%c0_12, %c0_13] : memref<4x16xf32, #tpu.memory_space<vmem>>, vector<4x16xf32>
    %cst_14 = arith.constant dense<0.000000e+00> : vector<4x128xf32>
    %25 = tpu.matmul %24, %23, %cst_14 {dimension_numbers = #tpu.dot_dimension_numbers<[1], [0], [0], [1], [0, 0, 1, 1], [], []>} : vector<4x16xf32>, vector<16x128xf32>, vector<4x128xf32> -> vector<4x128xf32>
    %c0_15 = arith.constant 0 : index
    %c0_16 = arith.constant 0 : index
    %26 = vector.load %arg7[%c0_15, %c0_16] : memref<4x1xf32, #tpu.memory_space<vmem>>, vector<4x1xf32>
    %27 = vector.broadcast %26 : vector<4x1xf32> to vector<4x128xf32>
    %28 = arith.addf %25, %27 : vector<4x128xf32>
    %c0_17 = arith.constant 0 : index
    %c0_18 = arith.constant 0 : index
    %29 = vector.load %arg8[%c0_17, %c0_18] : memref<4x128xf32, #tpu.memory_space<vmem>>, vector<4x128xf32>
    tpu.vector_store %arg8[%c0_17, %c0_18], %28 {strides = array<i32>} : memref<4x128xf32, #tpu.memory_space<vmem>>, vector<4x128xf32>,
    return
  }
  func.func @transform_0(%arg0: i32) -> (i32, i32) {
    %c0_i32 = arith.constant 0 : i32
    %c0_i32_0 = arith.constant 0 : i32
    return %c0_i32, %arg0 : i32, i32
  }
  func.func @transform_1(%arg0: i32) -> (i32, i32) {
    %c0_i32 = arith.constant 0 : i32
    %c0_i32_0 = arith.constant 0 : i32
    %c0_i32_1 = arith.constant 0 : i32
    return %c0_i32, %c0_i32_0 : i32, i32
  }
  func.func @transform_2(%arg0: i32) -> (i32, i32) {
    %c0_i32 = arith.constant 0 : i32
    %c0_i32_0 = arith.constant 0 : i32
    %c0_i32_1 = arith.constant 0 : i32
    return %c0_i32, %c0_i32_0 : i32, i32
  }
  func.func @transform_3(%arg0: i32) -> (i32, i32) {
    %c0_i32 = arith.constant 0 : i32
    %c0_i32_0 = arith.constant 0 : i32
    %c0_i32_1 = arith.constant 0 : i32
    return %c0_i32, %c0_i32_0 : i32, i32
  }
  func.func @transform_4(%arg0: i32) -> (i32, i32) {
    %c0_i32 = arith.constant 0 : i32
    %c0_i32_0 = arith.constant 0 : i32
    %c0_i32_1 = arith.constant 0 : i32
    return %c0_i32, %c0_i32_0 : i32, i32
  }
  func.func @transform_5(%arg0: i32) -> (i32, i32) {
    %c0_i32 = arith.constant 0 : i32
    %c0_i32_0 = arith.constant 0 : i32
    %c0_i32_1 = arith.constant 0 : i32
    return %c0_i32, %c0_i32_0 : i32, i32
  }
  func.func @transform_6(%arg0: i32) -> (i32, i32) {
    %c0_i32 = arith.constant 0 : i32
    %c0_i32_0 = arith.constant 0 : i32
    %c0_i32_1 = arith.constant 0 : i32
    return %c0_i32, %c0_i32_0 : i32, i32
  }
  func.func @transform_7(%arg0: i32) -> (i32, i32) {
    %c0_i32 = arith.constant 0 : i32
    %c0_i32_0 = arith.constant 0 : i32
    return %c0_i32, %arg0 : i32, i32
  }
}

</mosaic_0001>

<llo_original>
// kernel: tpu_custom_call.1
$region0: #{tpu_custom_call.1}
  #allocation0 [shape = 'u32[]', space=smem, size = 0x4, offset = 0x4, fixed_abs, tag = 'smem constant byte address 0x4 - core index']
  #allocation1 [shape = 'u32[144,128]{1,0:T(1,128)}', space=vmem, size = 0x12000, scoped, tag = 'internal scratch']
  %s0 = inlined_call_operand.vmem [shape: f32[16,128], index: 0, kind: input, shape index: {}]
  %s1 = inlined_call_operand.vmem [shape: f32[64,16], index: 1, kind: input, shape index: {}]
  %s2 = inlined_call_operand.vmem [shape: f32[64,1], index: 2, kind: input, shape index: {}]
  %s3 = inlined_call_operand.vmem [shape: f32[128,64], index: 3, kind: input, shape index: {}]
  %s4 = inlined_call_operand.vmem [shape: f32[128,1], index: 4, kind: input, shape index: {}]
  %s5 = inlined_call_operand.vmem [shape: f32[4,16], index: 5, kind: input, shape index: {}]
  %s6 = inlined_call_operand.vmem [shape: f32[4,1], index: 6, kind: input, shape index: {}]
  %s7 = inlined_call_operand.hbm [shape: f32[4,128], index: 7, kind: output, shape index: {}]
  %s8 = sld [smem:[#allocation0]]
  $region38: #{tpu_custom_call.1} parent=0
    _
  %s10 = ssub.s32 1, %s8
  %s11 = scalar_select 0, %s10, %s8
  $region1: #{tpu_custom_call.1} parent=0
    #allocation2 [shape = 'u8[2048]{0}', space=vmem, size = 0x800, scoped, tag = 'output window, operand 0, single buffered']
    #allocation3 [shape = 's32[1]{0}', space=sflag, size = 0x4, scoped, tag = 'scoped memory for tpu_custom_call.1']
    %12 = vsyncpa [#allocation3], 0
    // Predicated region
    $region2: #{tpu_custom_call.1} parent=1 // pred_check
      _
    $region3: #{tpu_custom_call.1} parent=1 // pred_check_branch
      %14 = sbr.rel (0) target = $region5
    $region4: #{tpu_custom_call.1} parent=1 // pred_region
      _
    $region5: #{tpu_custom_call.1} parent=1 // pred_fallthru
      _
    // Predicated region
    $region6: #{tpu_custom_call.1} parent=1 // pred_check
      _
    $region7: #{tpu_custom_call.1} parent=1 // pred_check_branch
      %16 = sbr.rel (0) target = $region9
    $region8: #{tpu_custom_call.1} parent=1 // pred_region
      _
    $region9: #{tpu_custom_call.1} parent=1 // pred_fallthru
      _
    // Predicated region
    $region10: #{tpu_custom_call.1} parent=1 // pred_check
      _
    $region11: #{tpu_custom_call.1} parent=1 // pred_check_branch
      %18 = sbr.rel (0) target = $region13
    $region12: #{tpu_custom_call.1} parent=1 // pred_region
      _
    $region13: #{tpu_custom_call.1} parent=1 // pred_fallthru
      _
    // Predicated region
    $region14: #{tpu_custom_call.1} parent=1 // pred_check
      _
    $region15: #{tpu_custom_call.1} parent=1 // pred_check_branch
      %20 = sbr.rel (0) target = $region17
    $region16: #{tpu_custom_call.1} parent=1 // pred_region
      _
    $region17: #{tpu_custom_call.1} parent=1 // pred_fallthru
      _
    // Predicated region
    $region18: #{tpu_custom_call.1} parent=1 // pred_check
      _
    $region19: #{tpu_custom_call.1} parent=1 // pred_check_branch
      %22 = sbr.rel (0) target = $region21
    $region20: #{tpu_custom_call.1} parent=1 // pred_region
      _
    $region21: #{tpu_custom_call.1} parent=1 // pred_fallthru
      _
    // Predicated region
    $region22: #{tpu_custom_call.1} parent=1 // pred_check
      _
    $region23: #{tpu_custom_call.1} parent=1 // pred_check_branch
      %24 = sbr.rel (0) target = $region25
    $region24: #{tpu_custom_call.1} parent=1 // pred_region
      _
    $region25: #{tpu_custom_call.1} parent=1 // pred_fallthru
      _
    // Predicated region
    $region26: #{tpu_custom_call.1} parent=1 // pred_check
      _
    $region27: #{tpu_custom_call.1} parent=1 // pred_check_branch
      %26 = sbr.rel (0) target = $region29
    $region28: #{tpu_custom_call.1} parent=1 // pred_region
      _
    $region29: #{tpu_custom_call.1} parent=1 // pred_fallthru
      _
    %v27 = vld [vmem:[%s0] sm:$0xff]
    %v28 = vld [vmem:[%s0 + $0x8] sm:$0xff]
    %v29 = vld [vmem:[%s1] sm:$0xff]
    %v30 = vld [vmem:[%s1 + $0x8] sm:$0xff]
    %v31 = vld [vmem:[%s1 + $0x10] sm:$0xff]
    %v32 = vld [vmem:[%s1 + $0x18] sm:$0xff]
    %v33 = vld [vmem:[%s1 + $0x20] sm:$0xff]
    %v34 = vld [vmem:[%s1 + $0x28] sm:$0xff]
    %v35 = vld [vmem:[%s1 + $0x30] sm:$0xff]
    %v36 = vld [vmem:[%s1 + $0x38] sm:$0xff]
    %v37 = vld [vmem:[%s2] sm:$0xff]
    %v38 = vld [vmem:[%s2 + $0x8] sm:$0xff]
    %v39 = vld [vmem:[%s2 + $0x10] sm:$0xff]
    %v40 = vld [vmem:[%s2 + $0x18] sm:$0xff]
    %v41 = vld [vmem:[%s2 + $0x20] sm:$0xff]
    %v42 = vld [vmem:[%s2 + $0x28] sm:$0xff]
    %v43 = vld [vmem:[%s2 + $0x30] sm:$0xff]
    %v44 = vld [vmem:[%s2 + $0x38] sm:$0xff]
    %46 = vset.pattern.permute.xlu0 0
    %47 = vperm.xlu0 %46, %v37
    %v48 = vpop.permute.xlu0 %47
    %51 = vset.pattern.permute.xlu0 0
    %52 = vperm.xlu0 %51, %v38
    %v53 = vpop.permute.xlu0 %52
    %56 = vset.pattern.permute.xlu0 0
    %57 = vperm.xlu0 %56, %v39
    %v58 = vpop.permute.xlu0 %57
    %61 = vset.pattern.permute.xlu0 0
    %62 = vperm.xlu0 %61, %v40
    %v63 = vpop.permute.xlu0 %62
    %66 = vset.pattern.permute.xlu0 0
    %67 = vperm.xlu0 %66, %v41
    %v68 = vpop.permute.xlu0 %67
    %71 = vset.pattern.permute.xlu0 0
    %72 = vperm.xlu0 %71, %v42
    %v73 = vpop.permute.xlu0 %72
    %76 = vset.pattern.permute.xlu0 0
    %77 = vperm.xlu0 %76, %v43
    %v78 = vpop.permute.xlu0 %77
    %81 = vset.pattern.permute.xlu0 0
    %82 = vperm.xlu0 %81, %v44
    %v83 = vpop.permute.xlu0 %82
    %vm85 = vcmask 130048
    %v87 = vsel %vm85, %v29, 0
    %v90 = vsel %vm85, %v30, 0
    %v93 = vsel %vm85, %v31, 0
    %v96 = vsel %vm85, %v32, 0
    %v99 = vsel %vm85, %v33, 0
    %v102 = vsel %vm85, %v34, 0
    %v105 = vsel %vm85, %v35, 0
    %v108 = vsel %vm85, %v36, 0
    %110 = vmatprep.subr.mxu0 0.0
    %111 = vmatpush1.msra.mxu0 %v27
    %112 = vmatprep.subr.mxu0 0.0
    %113 = vmatpush1.msra.mxu0 %v28
    %114 = vmatprep.subr.mxu0 0.0
    %115 = vmatpush1.msra.mxu0 0.0
    %116 = vmatprep.subr.mxu0 0.0
    %117 = vmatpush1.msra.mxu0 0.0
    %118 = vmatprep.subr.mxu0 0.0
    %119 = vmatpush1.msra.mxu0 0.0
    %120 = vmatprep.subr.mxu0 0.0
    %121 = vmatpush1.msra.mxu0 0.0
    %122 = vmatprep.subr.mxu0 0.0
    %123 = vmatpush1.msra.mxu0 0.0
    %124 = vmatprep.subr.mxu0 0.0
    %125 = vmatpush1.msra.mxu0 0.0
    %126 = vmatprep.subr.mxu0 0.0
    %127 = vmatpush1.msra.mxu0 0.0
    %128 = vmatprep.subr.mxu0 0.0
    %129 = vmatpush1.msra.mxu0 0.0
    %130 = vmatprep.subr.mxu0 0.0
    %131 = vmatpush1.msra.mxu0 0.0
    %132 = vmatprep.subr.mxu0 0.0
    %133 = vmatpush1.msra.mxu0 0.0
    %134 = vmatprep.subr.mxu0 0.0
    %135 = vmatpush1.msra.mxu0 0.0
    %136 = vmatprep.subr.mxu0 0.0
    %137 = vmatpush1.msra.mxu0 0.0
    %138 = vmatprep.subr.mxu0 0.0
    %139 = vmatpush1.msra.mxu0 0.0
    %140 = vmatprep.subr.mxu0 0.0
    %141 = vmatpush1.msra.mxu0 0.0
    %142 = vmatprep.subr.mxu0 0.0
    %143 = vmatpush1.msra.mxu0 0.0
    %144 = vmatprep.subr.mxu0 0.0
    %145 = vmatpush1.msra.mxu0 0.0
    %146 = vmatprep.subr.mxu0 0.0
    %147 = vmatpush1.msra.mxu0 0.0
    %148 = vmatprep.subr.mxu0 0.0
    %149 = vmatpush1.msra.mxu0 0.0
    %150 = vmatprep.subr.mxu0 0.0
    %151 = vmatpush1.msra.mxu0 0.0
    %152 = vmatprep.subr.mxu0 0.0
    %153 = vmatpush1.msra.mxu0 0.0
    %154 = vmatprep.subr.mxu0 0.0
    %155 = vmatpush1.msra.mxu0 0.0
    %156 = vmatprep.subr.mxu0 0.0
    %157 = vmatpush1.msra.mxu0 0.0
    %158 = vmatprep.subr.mxu0 0.0
    %159 = vmatpush1.msra.mxu0 0.0
    %160 = vmatprep.subr.mxu0 0.0
    %161 = vmatpush1.msra.mxu0 0.0
    %162 = vmatprep.subr.mxu0 0.0
    %163 = vmatpush1.msra.mxu0 0.0
    %164 = vmatprep.subr.mxu0 0.0
    %165 = vmatpush1.msra.mxu0 0.0
    %166 = vmatprep.subr.mxu0 0.0
    %167 = vmatpush1.msra.mxu0 0.0
    %168 = vmatprep.subr.mxu0 0.0
    %169 = vmatpush1.msra.mxu0 0.0
    %170 = vmatprep.subr.mxu0 0.0
    %171 = vmatpush1.msra.mxu0 0.0
    %172 = vmatprep.subr.mxu0 0.0
    %173 = vmatpush1.msra.mxu0 0.0
    %174 = vmatprep.mubr.f32.mxu0 0.0
    %175 = vmatmul.mubr.f32.gmra.mrb[0].mxu0 %v87
    %v176 = vpop.f32.mrb[0].mxu0
    %v177 = vadd.f32 %v48, %v176
    %v178 = vpop.f32.mrb[0].mxu0
    %179 = vmatprep.mubr.f32.mxu0 0.0
    %180 = vmatmul.mubr.f32.gmra.mrb[0].mxu0 %v90
    %v181 = vpop.f32.mrb[0].mxu0
    %v182 = vadd.f32 %v53, %v181
    %v183 = vpop.f32.mrb[0].mxu0
    %184 = vmatprep.mubr.f32.mxu0 0.0
    %185 = vmatmul.mubr.f32.gmra.mrb[0].mxu0 %v93
    %v186 = vpop.f32.mrb[0].mxu0
    %v187 = vadd.f32 %v58, %v186
    %v188 = vpop.f32.mrb[0].mxu0
    %189 = vmatprep.mubr.f32.mxu0 0.0
    %190 = vmatmul.mubr.f32.gmra.mrb[0].mxu0 %v96
    %v191 = vpop.f32.mrb[0].mxu0
    %v192 = vadd.f32 %v63, %v191
    %v193 = vpop.f32.mrb[0].mxu0
    %194 = vmatprep.mubr.f32.mxu0 0.0
    %195 = vmatmul.mubr.f32.gmra.mrb[0].mxu0 %v99
    %v196 = vpop.f32.mrb[0].mxu0
    %v197 = vadd.f32 %v68, %v196
    %v198 = vpop.f32.mrb[0].mxu0
    %199 = vmatprep.mubr.f32.mxu0 0.0
    %200 = vmatmul.mubr.f32.gmra.mrb[0].mxu0 %v102
    %v201 = vpop.f32.mrb[0].mxu0
    %v202 = vadd.f32 %v73, %v201
    %v203 = vpop.f32.mrb[0].mxu0
    %204 = vmatprep.mubr.f32.mxu0 0.0
    %205 = vmatmul.mubr.f32.gmra.mrb[0].mxu0 %v105
    %v206 = vpop.f32.mrb[0].mxu0
    %v207 = vadd.f32 %v78, %v206
    %v208 = vpop.f32.mrb[0].mxu0
    %209 = vmatprep.mubr.f32.mxu0 0.0
    %210 = vmatmul.mubr.f32.gmra.mrb[0].mxu0 %v108
    %v211 = vpop.f32.mrb[0].mxu0
    %v212 = vadd.f32 %v83, %v211
    %v213 = vpop.f32.mrb[0].mxu0
    %214 = vdwg.mxu0
    %v215 = vmax.f32 %v177, 0.0
    %v216 = vmax.f32 %v182, 0.0
    %v217 = vmax.f32 %v187, 0.0
    %v218 = vmax.f32 %v192, 0.0
    %v219 = vmax.f32 %v197, 0.0
    %v220 = vmax.f32 %v202, 0.0
    %v221 = vmax.f32 %v207, 0.0
    %v222 = vmax.f32 %v212, 0.0
    %v223 = vld [vmem:[%s3] sm:$0xff]
    %v224 = vld [vmem:[%s3 + $0x8] sm:$0xff]
    %v225 = vld [vmem:[%s3 + $0x10] sm:$0xff]
    %v226 = vld [vmem:[%s3 + $0x18] sm:$0xff]
    %v227 = vld [vmem:[%s3 + $0x20] sm:$0xff]
    %v228 = vld [vmem:[%s3 + $0x28] sm:$0xff]
    %v229 = vld [vmem:[%s3 + $0x30] sm:$0xff]
    %v230 = vld [vmem:[%s3 + $0x38] sm:$0xff]
    %v231 = vld [vmem:[%s3 + $0x40] sm:$0xff]
    %v232 = vld [vmem:[%s3 + $0x48] sm:$0xff]
    %v233 = vld [vmem:[%s3 + $0x50] sm:$0xff]
    %v234 = vld [vmem:[%s3 + $0x58] sm:$0xff]
    %v235 = vld [vmem:[%s3 + $0x60] sm:$0xff]
    %v236 = vld [vmem:[%s3 + $0x68] sm:$0xff]
    %v237 = vld [vmem:[%s3 + $0x70] sm:$0xff]
    %v238 = vld [vmem:[%s3 + $0x78] sm:$0xff]
    %v239 = vld [vmem:[%s4] sm:$0xff]
    %v240 = vld [vmem:[%s4 + $0x8] sm:$0xff]
    %v241 = vld [vmem:[%s4 + $0x10] sm:$0xff]
    %v242 = vld [vmem:[%s4 + $0x18] sm:$0xff]
    %v243 = vld [vmem:[%s4 + $0x20] sm:$0xff]
    %v244 = vld [vmem:[%s4 + $0x28] sm:$0xff]
    %v245 = vld [vmem:[%s4 + $0x30] sm:$0xff]
    %v246 = vld [vmem:[%s4 + $0x38] sm:$0xff]
    %v247 = vld [vmem:[%s4 + $0x40] sm:$0xff]
    %v248 = vld [vmem:[%s4 + $0x48] sm:$0xff]
    %v249 = vld [vmem:[%s4 + $0x50] sm:$0xff]
    %v250 = vld [vmem:[%s4 + $0x58] sm:$0xff]
    %v251 = vld [vmem:[%s4 + $0x60] sm:$0xff]
    %v252 = vld [vmem:[%s4 + $0x68] sm:$0xff]
    %v253 = vld [vmem:[%s4 + $0x70] sm:$0xff]
    %v254 = vld [vmem:[%s4 + $0x78] sm:$0xff]
    %256 = vset.pattern.permute.xlu0 0
    %257 = vperm.xlu0 %256, %v239
    %v258 = vpop.permute.xlu0 %257
    %261 = vset.pattern.permute.xlu0 0
    %262 = vperm.xlu0 %261, %v240
    %v263 = vpop.permute.xlu0 %262
    %266 = vset.pattern.permute.xlu0 0
    %267 = vperm.xlu0 %266, %v241
    %v268 = vpop.permute.xlu0 %267
    %271 = vset.pattern.permute.xlu0 0
    %272 = vperm.xlu0 %271, %v242
    %v273 = vpop.permute.xlu0 %272
    %276 = vset.pattern.permute.xlu0 0
    %277 = vperm.xlu0 %276, %v243
    %v278 = vpop.permute.xlu0 %277
    %281 = vset.pattern.permute.xlu0 0
    %282 = vperm.xlu0 %281, %v244
    %v283 = vpop.permute.xlu0 %282
    %286 = vset.pattern.permute.xlu0 0
    %287 = vperm.xlu0 %286, %v245
    %v288 = vpop.permute.xlu0 %287
    %291 = vset.pattern.permute.xlu0 0
    %292 = vperm.xlu0 %291, %v246
    %v293 = vpop.permute.xlu0 %292
    %296 = vset.pattern.permute.xlu0 0
    %297 = vperm.xlu0 %296, %v247
    %v298 = vpop.permute.xlu0 %297
    %301 = vset.pattern.permute.xlu0 0
    %302 = vperm.xlu0 %301, %v248
    %v303 = vpop.permute.xlu0 %302
    %306 = vset.pattern.permute.xlu0 0
    %307 = vperm.xlu0 %306, %v249
    %v308 = vpop.permute.xlu0 %307
    %311 = vset.pattern.permute.xlu0 0
    %312 = vperm.xlu0 %311, %v250
    %v313 = vpop.permute.xlu0 %312
    %316 = vset.pattern.permute.xlu0 0
    %317 = vperm.xlu0 %316, %v251
    %v318 = vpop.permute.xlu0 %317
    %321 = vset.pattern.permute.xlu0 0
    %322 = vperm.xlu0 %321, %v252
    %v323 = vpop.permute.xlu0 %322
    %326 = vset.pattern.permute.xlu0 0
    %327 = vperm.xlu0 %326, %v253
    %v328 = vpop.permute.xlu0 %327
    %331 = vset.pattern.permute.xlu0 0
    %332 = vperm.xlu0 %331, %v254
    %v333 = vpop.permute.xlu0 %332
    %vm335 = vcmask 523264
    %v337 = vsel %vm335, %v223, 0
    %v340 = vsel %vm335, %v224, 0
    %v343 = vsel %vm335, %v225, 0
    %v346 = vsel %vm335, %v226, 0
    %v349 = vsel %vm335, %v227, 0
    %v352 = vsel %vm335, %v228, 0
    %v355 = vsel %vm335, %v229, 0
    %v358 = vsel %vm335, %v230, 0
    %v361 = vsel %vm335, %v231, 0
    %v364 = vsel %vm335, %v232, 0
    %v367 = vsel %vm335, %v233, 0
    %v370 = vsel %vm335, %v234, 0
    %v373 = vsel %vm335, %v235, 0
    %v376 = vsel %vm335, %v236, 0
    %v379 = vsel %vm335, %v237, 0
    %v382 = vsel %vm335, %v238, 0
    %384 = vmatprep.subr.mxu0 0.0
    %385 = vmatpush1.msra.mxu0 %v215
    %386 = vmatprep.subr.mxu0 0.0
    %387 = vmatpush1.msra.mxu0 %v216
    %388 = vmatprep.subr.mxu0 0.0
    %389 = vmatpush1.msra.mxu0 %v217
    %390 = vmatprep.subr.mxu0 0.0
    %391 = vmatpush1.msra.mxu0 %v218
    %392 = vmatprep.subr.mxu0 0.0
    %393 = vmatpush1.msra.mxu0 %v219
    %394 = vmatprep.subr.mxu0 0.0
    %395 = vmatpush1.msra.mxu0 %v220
    %396 = vmatprep.subr.mxu0 0.0
    %397 = vmatpush1.msra.mxu0 %v221
    %398 = vmatprep.subr.mxu0 0.0
    %399 = vmatpush1.msra.mxu0 %v222
    %400 = vmatprep.subr.mxu0 0.0
    %401 = vmatpush1.msra.mxu0 0.0
    %402 = vmatprep.subr.mxu0 0.0
    %403 = vmatpush1.msra.mxu0 0.0
    %404 = vmatprep.subr.mxu0 0.0
    %405 = vmatpush1.msra.mxu0 0.0
    %406 = vmatprep.subr.mxu0 0.0
    %407 = vmatpush1.msra.mxu0 0.0
    %408 = vmatprep.subr.mxu0 0.0
    %409 = vmatpush1.msra.mxu0 0.0
    %410 = vmatprep.subr.mxu0 0.0
    %411 = vmatpush1.msra.mxu0 0.0
    %412 = vmatprep.subr.mxu0 0.0
    %413 = vmatpush1.msra.mxu0 0.0
    %414 = vmatprep.subr.mxu0 0.0
    %415 = vmatpush1.msra.mxu0 0.0
    %416 = vmatprep.subr.mxu0 0.0
    %417 = vmatpush1.msra.mxu0 0.0
    %418 = vmatprep.subr.mxu0 0.0
    %419 = vmatpush1.msra.mxu0 0.0
    %420 = vmatprep.subr.mxu0 0.0
    %421 = vmatpush1.msra.mxu0 0.0
    %422 = vmatprep.subr.mxu0 0.0
    %423 = vmatpush1.msra.mxu0 0.0
    %424 = vmatprep.subr.mxu0 0.0
    %425 = vmatpush1.msra.mxu0 0.0
    %426 = vmatprep.subr.mxu0 0.0
    %427 = vmatpush1.msra.mxu0 0.0
    %428 = vmatprep.subr.mxu0 0.0
    %429 = vmatpush1.msra.mxu0 0.0
    %430 = vmatprep.subr.mxu0 0.0
    %431 = vmatpush1.msra.mxu0 0.0
    %432 = vmatprep.subr.mxu0 0.0
    %433 = vmatpush1.msra.mxu0 0.0
    %434 = vmatprep.subr.mxu0 0.0
    %435 = vmatpush1.msra.mxu0 0.0
    %436 = vmatprep.subr.mxu0 0.0
    %437 = vmatpush1.msra.mxu0 0.0
    %438 = vmatprep.subr.mxu0 0.0
    %439 = vmatpush1.msra.mxu0 0.0
    %440 = vmatprep.subr.mxu0 0.0
    %441 = vmatpush1.msra.mxu0 0.0
    %442 = vmatprep.subr.mxu0 0.0
    %443 = vmatpush1.msra.mxu0 0.0
    %444 = vmatprep.subr.mxu0 0.0
    %445 = vmatpush1.msra.mxu0 0.0
    %446 = vmatprep.subr.mxu0 0.0
    %447 = vmatpush1.msra.mxu0 0.0
    %448 = vmatprep.mubr.f32.mxu0 0.0
    %449 = vmatmul.mubr.f32.gmra.mrb[0].mxu0 %v337
    %v450 = vpop.f32.mrb[0].mxu0
    %v451 = vadd.f32 %v258, %v450
    %v452 = vpop.f32.mrb[0].mxu0
    %453 = vmatprep.mubr.f32.mxu0 0.0
    %454 = vmatmul.mubr.f32.gmra.mrb[0].mxu0 %v340
    %v455 = vpop.f32.mrb[0].mxu0
    %v456 = vadd.f32 %v263, %v455
    %v457 = vpop.f32.mrb[0].mxu0
    %458 = vmatprep.mubr.f32.mxu0 0.0
    %459 = vmatmul.mubr.f32.gmra.mrb[0].mxu0 %v343
    %v460 = vpop.f32.mrb[0].mxu0
    %v461 = vadd.f32 %v268, %v460
    %v462 = vpop.f32.mrb[0].mxu0
    %463 = vmatprep.mubr.f32.mxu0 0.0
    %464 = vmatmul.mubr.f32.gmra.mrb[0].mxu0 %v346
    %v465 = vpop.f32.mrb[0].mxu0
    %v466 = vadd.f32 %v273, %v465
    %v467 = vpop.f32.mrb[0].mxu0
    %468 = vmatprep.mubr.f32.mxu0 0.0
    %469 = vmatmul.mubr.f32.gmra.mrb[0].mxu0 %v349
    %v470 = vpop.f32.mrb[0].mxu0
    %v471 = vadd.f32 %v278, %v470
    %v472 = vpop.f32.mrb[0].mxu0
    %473 = vmatprep.mubr.f32.mxu0 0.0
    %474 = vmatmul.mubr.f32.gmra.mrb[0].mxu0 %v352
    %v475 = vpop.f32.mrb[0].mxu0
    %v476 = vadd.f32 %v283, %v475
    %v477 = vpop.f32.mrb[0].mxu0
    %478 = vmatprep.mubr.f32.mxu0 0.0
    %479 = vmatmul.mubr.f32.gmra.mrb[0].mxu0 %v355
    %v480 = vpop.f32.mrb[0].mxu0
    %v481 = vadd.f32 %v288, %v480
    %v482 = vpop.f32.mrb[0].mxu0
    %483 = vmatprep.mubr.f32.mxu0 0.0
    %484 = vmatmul.mubr.f32.gmra.mrb[0].mxu0 %v358
    %v485 = vpop.f32.mrb[0].mxu0
    %v486 = vadd.f32 %v293, %v485
    %v487 = vpop.f32.mrb[0].mxu0
    %488 = vmatprep.mubr.f32.mxu0 0.0
    %489 = vmatmul.mubr.f32.gmra.mrb[0].mxu0 %v361
    %v490 = vpop.f32.mrb[0].mxu0
    %v491 = vadd.f32 %v298, %v490
    %v492 = vpop.f32.mrb[0].mxu0
    %493 = vmatprep.mubr.f32.mxu0 0.0
    %494 = vmatmul.mubr.f32.gmra.mrb[0].mxu0 %v364
    %v495 = vpop.f32.mrb[0].mxu0
    %v496 = vadd.f32 %v303, %v495
    %v497 = vpop.f32.mrb[0].mxu0
    %498 = vmatprep.mubr.f32.mxu0 0.0
    %499 = vmatmul.mubr.f32.gmra.mrb[0].mxu0 %v367
    %v500 = vpop.f32.mrb[0].mxu0
    %v501 = vadd.f32 %v308, %v500
    %v502 = vpop.f32.mrb[0].mxu0
    %503 = vmatprep.mubr.f32.mxu0 0.0
    %504 = vmatmul.mubr.f32.gmra.mrb[0].mxu0 %v370
    %v505 = vpop.f32.mrb[0].mxu0
    %v506 = vadd.f32 %v313, %v505
    %v507 = vpop.f32.mrb[0].mxu0
    %508 = vmatprep.mubr.f32.mxu0 0.0
    %509 = vmatmul.mubr.f32.gmra.mrb[0].mxu0 %v373
    %v510 = vpop.f32.mrb[0].mxu0
    %v511 = vadd.f32 %v318, %v510
    %v512 = vpop.f32.mrb[0].mxu0
    %513 = vmatprep.mubr.f32.mxu0 0.0
    %514 = vmatmul.mubr.f32.gmra.mrb[0].mxu0 %v376
    %v515 = vpop.f32.mrb[0].mxu0
    %v516 = vadd.f32 %v323, %v515
    %v517 = vpop.f32.mrb[0].mxu0
    %518 = vmatprep.mubr.f32.mxu0 0.0
    %519 = vmatmul.mubr.f32.gmra.mrb[0].mxu0 %v379
    %v520 = vpop.f32.mrb[0].mxu0
    %v521 = vadd.f32 %v328, %v520
    %v522 = vpop.f32.mrb[0].mxu0
    %523 = vmatprep.mubr.f32.mxu0 0.0
    %524 = vmatmul.mubr.f32.gmra.mrb[0].mxu0 %v382
    %v525 = vpop.f32.mrb[0].mxu0
    %v526 = vadd.f32 %v333, %v525
    %v527 = vpop.f32.mrb[0].mxu0
    %528 = vdwg.mxu0
    %v529 = vmax.f32 %v451, 0.0
    %v530 = vmax.f32 %v456, 0.0
    %v531 = vmax.f32 %v461, 0.0
    %v532 = vmax.f32 %v466, 0.0
    %v533 = vmax.f32 %v471, 0.0
    %v534 = vmax.f32 %v476, 0.0
    %v535 = vmax.f32 %v481, 0.0
    %v536 = vmax.f32 %v486, 0.0
    %v537 = vmax.f32 %v491, 0.0
    %v538 = vmax.f32 %v496, 0.0
    %v539 = vmax.f32 %v501, 0.0
    %v540 = vmax.f32 %v506, 0.0
    %v541 = vmax.f32 %v511, 0.0
    %v542 = vmax.f32 %v516, 0.0
    %v543 = vmax.f32 %v521, 0.0
    %v544 = vmax.f32 %v526, 0.0
    %v545 = vmax.f32 %v529, %v537
    %v546 = vmax.f32 %v530, %v538
    %v547 = vmax.f32 %v531, %v539
    %v548 = vmax.f32 %v532, %v540
    %v549 = vmax.f32 %v533, %v541
    %v550 = vmax.f32 %v534, %v542
    %v551 = vmax.f32 %v535, %v543
    %v552 = vmax.f32 %v536, %v544
    %v553 = vmax.f32 %v545, %v549
    %v554 = vmax.f32 %v546, %v550
    %v555 = vmax.f32 %v547, %v551
    %v556 = vmax.f32 %v548, %v552
    %v557 = vmax.f32 %v553, %v555
    %v558 = vmax.f32 %v554, %v556
    %v559 = vld [vmem:[%s5] sm:$0xf]
    %v560 = vld [vmem:[%s6] sm:$0xf]
    %562 = vset.pattern.permute.xlu0 0
    %563 = vperm.xlu0 %562, %v560
    %v564 = vpop.permute.xlu0 %563
    %v567 = vsel %vm85, %v559, 0
    %569 = vmatprep.subr.mxu0 0.0
    %570 = vmatpush1.msra.mxu0 %v557
    %571 = vmatprep.subr.mxu0 0.0
    %572 = vmatpush1.msra.mxu0 %v558
    %573 = vmatprep.subr.mxu0 0.0
    %574 = vmatpush1.msra.mxu0 0.0
    %575 = vmatprep.subr.mxu0 0.0
    %576 = vmatpush1.msra.mxu0 0.0
    %577 = vmatprep.subr.mxu0 0.0
    %578 = vmatpush1.msra.mxu0 0.0
    %579 = vmatprep.subr.mxu0 0.0
    %580 = vmatpush1.msra.mxu0 0.0
    %581 = vmatprep.subr.mxu0 0.0
    %582 = vmatpush1.msra.mxu0 0.0
    %583 = vmatprep.subr.mxu0 0.0
    %584 = vmatpush1.msra.mxu0 0.0
    %585 = vmatprep.subr.mxu0 0.0
    %586 = vmatpush1.msra.mxu0 0.0
    %587 = vmatprep.subr.mxu0 0.0
    %588 = vmatpush1.msra.mxu0 0.0
    %589 = vmatprep.subr.mxu0 0.0
    %590 = vmatpush1.msra.mxu0 0.0
    %591 = vmatprep.subr.mxu0 0.0
    %592 = vmatpush1.msra.mxu0 0.0
    %593 = vmatprep.subr.mxu0 0.0
    %594 = vmatpush1.msra.mxu0 0.0
    %595 = vmatprep.subr.mxu0 0.0
    %596 = vmatpush1.msra.mxu0 0.0
    %597 = vmatprep.subr.mxu0 0.0
    %598 = vmatpush1.msra.mxu0 0.0
    %599 = vmatprep.subr.mxu0 0.0
    %600 = vmatpush1.msra.mxu0 0.0
    %601 = vmatprep.subr.mxu0 0.0
    %602 = vmatpush1.msra.mxu0 0.0
    %603 = vmatprep.subr.mxu0 0.0
    %604 = vmatpush1.msra.mxu0 0.0
    %605 = vmatprep.subr.mxu0 0.0
    %606 = vmatpush1.msra.mxu0 0.0
    %607 = vmatprep.subr.mxu0 0.0
    %608 = vmatpush1.msra.mxu0 0.0
    %609 = vmatprep.subr.mxu0 0.0
    %610 = vmatpush1.msra.mxu0 0.0
    %611 = vmatprep.subr.mxu0 0.0
    %612 = vmatpush1.msra.mxu0 0.0
    %613 = vmatprep.subr.mxu0 0.0
    %614 = vmatpush1.msra.mxu0 0.0
    %615 = vmatprep.subr.mxu0 0.0
    %616 = vmatpush1.msra.mxu0 0.0
    %617 = vmatprep.subr.mxu0 0.0
    %618 = vmatpush1.msra.mxu0 0.0
    %619 = vmatprep.subr.mxu0 0.0
    %620 = vmatpush1.msra.mxu0 0.0
    %621 = vmatprep.subr.mxu0 0.0
    %622 = vmatpush1.msra.mxu0 0.0
    %623 = vmatprep.subr.mxu0 0.0
    %624 = vmatpush1.msra.mxu0 0.0
    %625 = vmatprep.subr.mxu0 0.0
    %626 = vmatpush1.msra.mxu0 0.0
    %627 = vmatprep.subr.mxu0 0.0
    %628 = vmatpush1.msra.mxu0 0.0
    %629 = vmatprep.subr.mxu0 0.0
    %630 = vmatpush1.msra.mxu0 0.0
    %631 = vmatprep.subr.mxu0 0.0
    %632 = vmatpush1.msra.mxu0 0.0
    %633 = vmatprep.mubr.f32.mxu0 0.0
    %634 = vmatmul.mubr.f32.gmra.mrb[0].mxu0 %v567
    %v635 = vpop.f32.mrb[0].mxu0
    %v636 = vadd.f32 %v564, %v635
    %v637 = vpop.f32.mrb[0].mxu0
    %638 = vdwg.mxu0
    %639 = vst [vmem:[#allocation2] sm:$0xf] %v636
    // Predicated region
    $region30: #{tpu_custom_call.1} parent=1 // pred_check
      _
    $region31: #{tpu_custom_call.1} parent=1 // pred_check_branch
      %641 = sbr.rel (0) target = $region33
    $region32: #{tpu_custom_call.1} parent=1 // pred_region
      %s643 = ssub.s32 64, 64
      %644 = vsyncadd [#allocation3], %s643
      %s646 = sshll.u32 [#allocation2], 4
      %s647 = int_to_ptr.vmem [resolvable:$true] %s646
      %649 = dma.vmem_to_hbm [thread:$0]  %s647, 64, %s7, [#allocation3]
    $region33: #{tpu_custom_call.1} parent=1 // pred_fallthru
      _
    // Predicated region
    $region34: #{tpu_custom_call.1} parent=1 // pred_check
      _
    $region35: #{tpu_custom_call.1} parent=1 // pred_check_branch
      %651 = sbr.rel (0) target = $region37
    $region36: #{tpu_custom_call.1} parent=1 // pred_region
      %652 = dma.done [#allocation3], 64
    $region37: #{tpu_custom_call.1} parent=1 // pred_fallthru
      _
    %653 = vsyncpa [#allocation3], 1

</llo_original>
